<compile_context>
chip_gen: v7x
topology: tpu7x:2x2x1
jax: 0.10.0
libtpu: 0.0.40
codegen_flags: <defaults>
</compile_context>

<pallas_src>
import functools

import jax
import jax.numpy as jnp
from jax.experimental import pallas as pl
from jax.experimental.pallas import tpu as pltpu


def _round_up(x, m):
    return ((x + m - 1) // m) * m


def _triplet_kernel(xr_ref, xt_ref, sqa_ref, hsqb_ref, lc_ref, lr_ref,
                    out_ref, mpos_scr, mneg_scr, *, margin):
    j = pl.program_id(1)

    @pl.when(j == 0)
    def _init():
        mpos_scr[...] = jnp.full(mpos_scr.shape, jnp.inf, jnp.float32)
        mneg_scr[...] = jnp.full(mneg_scr.shape, -jnp.inf, jnp.float32)

    # Gram block on the MXU: (TM, D) @ (D, TN), f32 accumulation, no transpose.
    g = jnp.dot(xr_ref[...], xt_ref[...], preferred_element_type=jnp.float32)

    # m = <a,b> - 0.5*||b||^2  =>  d^2 = ||a||^2 - 2*m (monotone decreasing in
    # m).  Hard positive (max d^2) == min m over same-label columns; hard
    # negative (min d^2) == max m over different-label columns.  Padded
    # columns: sentinel label (never equal to a real label -> out of the
    # positive min) and half_sq = +inf (m = -inf -> out of the negative max).
    m = g - hsqb_ref[...]                                  # (tm, tn)
    same = lc_ref[...] == lr_ref[...]                      # (tm, tn)

    pos = jnp.min(jnp.where(same, m, jnp.inf), axis=1, keepdims=True)
    neg = jnp.max(jnp.where(same, -jnp.inf, m), axis=1, keepdims=True)

    mpos_scr[...] = jnp.minimum(mpos_scr[...], pos)
    mneg_scr[...] = jnp.maximum(mneg_scr[...], neg)

    @pl.when(j == pl.num_programs(1) - 1)
    def _finalize():
        sq_a = sqa_ref[...]                                # (tm, 1)
        d_ap2 = sq_a - 2.0 * mpos_scr[...]
        d_an2 = sq_a - 2.0 * mneg_scr[...]
        # clamp(1e-6) + sqrt only on the two mined (tm, 1) vectors.
        dist_ap = jnp.sqrt(jnp.maximum(d_ap2, 1e-6))
        dist_an = jnp.sqrt(jnp.maximum(d_an2, 1e-6))
        # MarginRankingLoss(margin)(dist_an, dist_ap, y=1), per anchor.
        out_ref[...] = jnp.maximum(dist_ap - dist_an + jnp.float32(margin), 0.0)


def triplet_loss(inputs, targets, margin=0.3, tm_max=256, tn_max=1024):
    """inputs: (N, D) float, targets: (N,) or (N, 1) int labels -> scalar loss."""
    n, d = inputs.shape
    t = jnp.asarray(targets).reshape(n).astype(jnp.int32)
    # Sentinel label that cannot collide with any real label (runtime min - 1).
    sentinel = jnp.min(t) - 1

    # --- Row (anchor) tiling: TM multiple of 8, <= tm_max. ---
    if n <= tm_max:
        tm = _round_up(n, 8)
    else:
        tm = tm_max
    n_rows = _round_up(n, tm)

    # --- Column (candidate) tiling: lane-dense (multiple of 128), balanced. ---
    n_lane = _round_up(n, 128)
    if n_lane <= tn_max:
        tn = n_lane
        n_cols = tn
    else:
        nblk = -(-n_lane // tn_max)
        tn = _round_up(-(-n_lane // nblk), 128)
        n_cols = tn * nblk

    xf = inputs.astype(jnp.float32)
    sq = jnp.sum(xf * xf, axis=1)                          # (n,) squared norms

    # Row-side operands (padded anchor rows are discarded after the kernel).
    pad_r = n_rows - n
    x_rows = jnp.pad(inputs, ((0, pad_r), (0, 0)))
    sq_col = jnp.pad(sq, (0, pad_r)).reshape(n_rows, 1)
    t_col = jnp.concatenate(
        [t, jnp.full((pad_r,), sentinel, jnp.int32)]).reshape(n_rows, 1)

    # Column-side operands (sentinel label + half_sq=+inf mask padded columns).
    pad_c = n_cols - n
    x_cols_t = jnp.pad(inputs, ((0, pad_c), (0, 0))).T     # (d, n_cols)
    t_row = jnp.concatenate(
        [t, jnp.full((pad_c,), sentinel, jnp.int32)]).reshape(1, n_cols)
    half_sq_row = jnp.concatenate(
        [0.5 * sq, jnp.full((pad_c,), jnp.inf, jnp.float32)]).reshape(1, n_cols)

    grid = (n_rows // tm, n_cols // tn)
    kernel = functools.partial(_triplet_kernel, margin=float(margin))

    per_anchor = pl.pallas_call(
        kernel,
        out_shape=jax.ShapeDtypeStruct((n_rows, 1), jnp.float32),
        grid_spec=pltpu.PrefetchScalarGridSpec(
            num_scalar_prefetch=0,
            grid=grid,
            in_specs=[
                pl.BlockSpec((tm, d), lambda i, j: (i, 0)),   # anchor rows
                pl.BlockSpec((d, tn), lambda i, j: (0, j)),   # candidates^T
                pl.BlockSpec((tm, 1), lambda i, j: (i, 0)),   # ||a||^2
                pl.BlockSpec((1, tn), lambda i, j: (0, j)),   # 0.5*||b||^2 (+inf pad)
                pl.BlockSpec((tm, 1), lambda i, j: (i, 0)),   # anchor labels
                pl.BlockSpec((1, tn), lambda i, j: (0, j)),   # candidate labels
            ],
            out_specs=pl.BlockSpec((tm, 1), lambda i, j: (i, 0)),
            scratch_shapes=[
                pltpu.VMEM((tm, 1), jnp.float32),   # running min of m (positives)
                pltpu.VMEM((tm, 1), jnp.float32),   # running max of m (negatives)
            ],
        ),
        compiler_params=pltpu.CompilerParams(
            dimension_semantics=("parallel", "arbitrary")),
    )(x_rows, x_cols_t, sq_col, half_sq_row, t_col, t_row)

    # Tiny O(N) mean done in plain JAX (drop padded anchor rows).
    return jnp.sum(per_anchor[:n, 0]) / jnp.float32(n)


def _reference(inputs, targets, margin=0.3):
    """Pure-JAX reference mirroring the PyTorch forward (non-val path)."""
    x = inputs.astype(jnp.float32)
    n = x.shape[0]
    t = jnp.asarray(targets).reshape(n)
    sq = jnp.sum(x * x, axis=1, keepdims=True)
    dist = sq + sq.T - 2.0 * jnp.matmul(x, x.T,
                                        precision=jax.lax.Precision.HIGHEST)
    dist1 = jnp.sqrt(jnp.maximum(dist, 1e-6))
    mask = t[:, None] == t[None, :]
    dist_ap = jnp.max(jnp.where(mask, dist1, -jnp.inf), axis=1)
    dist_an = jnp.min(jnp.where(mask, jnp.inf, dist1), axis=1)
    return jnp.mean(jnp.maximum(dist_ap - dist_an + margin, 0.0))


if __name__ == "__main__":
    key = jax.random.PRNGKey(0)
    margin = 0.3
    k1, k2, k3 = jax.random.split(key, 3)

    # Case 1: single-tile path — batch of 8 fingerprints of length 32,
    # 4 identities x 2 samples (targets shaped (N, 1) as in the module).
    n1, d1 = 8, 32
    x1 = jax.random.normal(k1, (n1, d1), dtype=jnp.float32)
    t1 = jnp.array([0, 0, 1, 1, 2, 2, 3, 3], dtype=jnp.int32).reshape(n1, 1)
    loss1 = jax.block_until_ready(triplet_loss(x1, t1, margin=margin))
    ref1 = _reference(x1, t1, margin=margin)
    assert jnp.allclose(loss1, ref1, rtol=1e-3, atol=1e-3), (loss1, ref1)

    # Case 2: default tiling with column padding (N=200 -> 256-wide col tile).
    n2, d2 = 200, 64
    x2 = jax.random.normal(k2, (n2, d2), dtype=jnp.float32)
    t2 = jax.random.randint(k3, (n2, 1), 0, 16, dtype=jnp.int32)
    loss2 = jax.block_until_ready(triplet_loss(x2, t2, margin=margin))
    ref2 = _reference(x2, t2, margin=margin)
    assert jnp.allclose(loss2, ref2, rtol=5e-3, atol=5e-3), (loss2, ref2)

    # Case 3: force a multi-block grid (4 row blocks x 2 col blocks) to
    # exercise the running min/max accumulators and padded-column masking.
    loss3 = jax.block_until_ready(
        triplet_loss(x2, t2, margin=margin, tm_max=64, tn_max=128))
    assert jnp.allclose(loss3, ref2, rtol=5e-3, atol=5e-3), (loss3, ref2)

    print("KERNEL_OK")
</pallas_src>

<mosaic_0001>
module attributes {stable_mosaic.version = 11 : i64} {
  func.func @_triplet_kernel(%arg0: i32, %arg1: i32, %arg2: memref<8x32xf32, #tpu.memory_space<vmem>>, %arg3: memref<32x128xf32, #tpu.memory_space<vmem>>, %arg4: memref<8x1xf32, #tpu.memory_space<vmem>>, %arg5: memref<1x128xf32, #tpu.memory_space<vmem>>, %arg6: memref<8x1xi32, #tpu.memory_space<vmem>>, %arg7: memref<1x128xi32, #tpu.memory_space<vmem>>, %arg8: memref<8x1xf32, #tpu.memory_space<vmem>>, %arg9: memref<8x1xf32, #tpu.memory_space<vmem>>, %arg10: memref<8x1xf32, #tpu.memory_space<vmem>>) attributes {dimension_semantics = [#tpu.dimension_semantics<parallel>, #tpu.dimension_semantics<arbitrary>], iteration_bounds = array<i64: 1, 1>, scalar_prefetch = 0 : i64, scratch_operands = 2 : i64, tpu.core_type = #tpu.core_type<tc>, window_params = [{transform_indices = @transform_0, window_bounds = array<i64: 8, 32>}, {transform_indices = @transform_1, window_bounds = array<i64: 32, 128>}, {transform_indices = @transform_2, window_bounds = array<i64: 8, 1>}, {transform_indices = @transform_3, window_bounds = array<i64: 1, 128>}, {transform_indices = @transform_4, window_bounds = array<i64: 8, 1>}, {transform_indices = @transform_5, window_bounds = array<i64: 1, 128>}, {transform_indices = @transform_6, window_bounds = array<i64: 8, 1>}]} {
    %c0_i32 = arith.constant 0 : i32
    %0 = arith.cmpi eq, %arg1, %c0_i32 : i32
    %1 = arith.extui %0 : i1 to i32
    %c0_i32_0 = arith.constant 0 : i32
    %2 = arith.cmpi ne, %1, %c0_i32_0 : i32
    scf.if %2 {
      %cst_24 = arith.constant 0x7F800000 : f32
      %31 = vector.broadcast %cst_24 : f32 to vector<8x1xf32>
      %c0_25 = arith.constant 0 : index
      %c0_26 = arith.constant 0 : index
      %32 = vector.load %arg9[%c0_25, %c0_26] : memref<8x1xf32, #tpu.memory_space<vmem>>, vector<8x1xf32>
      tpu.vector_store %arg9[%c0_25, %c0_26], %31 {strides = array<i32>} : memref<8x1xf32, #tpu.memory_space<vmem>>, vector<8x1xf32>,
      %cst_27 = arith.constant 0xFF800000 : f32
      %33 = vector.broadcast %cst_27 : f32 to vector<8x1xf32>
      %c0_28 = arith.constant 0 : index
      %c0_29 = arith.constant 0 : index
      %34 = vector.load %arg10[%c0_28, %c0_29] : memref<8x1xf32, #tpu.memory_space<vmem>>, vector<8x1xf32>
      tpu.vector_store %arg10[%c0_28, %c0_29], %33 {strides = array<i32>} : memref<8x1xf32, #tpu.memory_space<vmem>>, vector<8x1xf32>,
    } else {
    }
    %c0 = arith.constant 0 : index
    %c0_1 = arith.constant 0 : index
    %3 = vector.load %arg2[%c0, %c0_1] : memref<8x32xf32, #tpu.memory_space<vmem>>, vector<8x32xf32>
    %c0_2 = arith.constant 0 : index
    %c0_3 = arith.constant 0 : index
    %4 = vector.load %arg3[%c0_2, %c0_3] : memref<32x128xf32, #tpu.memory_space<vmem>>, vector<32x128xf32>
    %cst = arith.constant dense<0.000000e+00> : vector<8x128xf32>
    %5 = tpu.matmul %3, %4, %cst {dimension_numbers = #tpu.dot_dimension_numbers<[1], [0], [0], [1], [0, 0, 1, 1], [], []>} : vector<8x32xf32>, vector<32x128xf32>, vector<8x128xf32> -> vector<8x128xf32>
    %c0_4 = arith.constant 0 : index
    %c0_5 = arith.constant 0 : index
    %6 = vector.load %arg5[%c0_4, %c0_5] : memref<1x128xf32, #tpu.memory_space<vmem>>, vector<1x128xf32>
    %7 = vector.broadcast %6 : vector<1x128xf32> to vector<8x128xf32>
    %8 = arith.subf %5, %7 : vector<8x128xf32>
    %c0_6 = arith.constant 0 : index
    %c0_7 = arith.constant 0 : index
    %9 = vector.load %arg6[%c0_6, %c0_7] : memref<8x1xi32, #tpu.memory_space<vmem>>, vector<8x1xi32>
    %c0_8 = arith.constant 0 : index
    %c0_9 = arith.constant 0 : index
    %10 = vector.load %arg7[%c0_8, %c0_9] : memref<1x128xi32, #tpu.memory_space<vmem>>, vector<1x128xi32>
    %11 = vector.broadcast %9 : vector<8x1xi32> to vector<8x128xi32>
    %12 = vector.broadcast %10 : vector<1x128xi32> to vector<8x128xi32>
    %13 = arith.cmpi eq, %11, %12 : vector<8x128xi32>
    %cst_10 = arith.constant 0x7F800000 : f32
    %14 = vector.broadcast %cst_10 : f32 to vector<8x128xf32>
    %15 = arith.select %13, %8, %14 : vector<8x128xi1>, vector<8x128xf32>
    %cst_11 = arith.constant dense<0x7F800000> : vector<8xf32>
    %16 = vector.multi_reduction <minimumf>, %15, %cst_11 [1] : vector<8x128xf32> to vector<8xf32>
    %17 = vector.shape_cast %16 : vector<8xf32> to vector<8x1xf32>
    %cst_12 = arith.constant 0xFF800000 : f32
    %18 = vector.broadcast %cst_12 : f32 to vector<8x128xf32>
    %19 = arith.select %13, %18, %8 : vector<8x128xi1>, vector<8x128xf32>
    %cst_13 = arith.constant dense<0xFF800000> : vector<8xf32>
    %20 = vector.multi_reduction <maximumf>, %19, %cst_13 [1] : vector<8x128xf32> to vector<8xf32>
    %21 = vector.shape_cast %20 : vector<8xf32> to vector<8x1xf32>
    %c0_14 = arith.constant 0 : index
    %c0_15 = arith.constant 0 : index
    %22 = vector.load %arg9[%c0_14, %c0_15] : memref<8x1xf32, #tpu.memory_space<vmem>>, vector<8x1xf32>
    %23 = arith.minimumf %22, %17 : vector<8x1xf32>
    %c0_16 = arith.constant 0 : index
    %c0_17 = arith.constant 0 : index
    %24 = vector.load %arg9[%c0_16, %c0_17] : memref<8x1xf32, #tpu.memory_space<vmem>>, vector<8x1xf32>
    tpu.vector_store %arg9[%c0_16, %c0_17], %23 {strides = array<i32>} : memref<8x1xf32, #tpu.memory_space<vmem>>, vector<8x1xf32>,
    %c0_18 = arith.constant 0 : index
    %c0_19 = arith.constant 0 : index
    %25 = vector.load %arg10[%c0_18, %c0_19] : memref<8x1xf32, #tpu.memory_space<vmem>>, vector<8x1xf32>
    %26 = arith.maximumf %25, %21 : vector<8x1xf32>
    %c0_20 = arith.constant 0 : index
    %c0_21 = arith.constant 0 : index
    %27 = vector.load %arg10[%c0_20, %c0_21] : memref<8x1xf32, #tpu.memory_space<vmem>>, vector<8x1xf32>
    tpu.vector_store %arg10[%c0_20, %c0_21], %26 {strides = array<i32>} : memref<8x1xf32, #tpu.memory_space<vmem>>, vector<8x1xf32>,
    %c0_i32_22 = arith.constant 0 : i32
    %28 = arith.cmpi eq, %arg1, %c0_i32_22 : i32
    %29 = arith.extui %28 : i1 to i32
    %c0_i32_23 = arith.constant 0 : i32
    %30 = arith.cmpi ne, %29, %c0_i32_23 : i32
    scf.if %30 {
      %c0_24 = arith.constant 0 : index
      %c0_25 = arith.constant 0 : index
      %31 = vector.load %arg4[%c0_24, %c0_25] : memref<8x1xf32, #tpu.memory_space<vmem>>, vector<8x1xf32>
      %c0_26 = arith.constant 0 : index
      %c0_27 = arith.constant 0 : index
      %32 = vector.load %arg9[%c0_26, %c0_27] : memref<8x1xf32, #tpu.memory_space<vmem>>, vector<8x1xf32>
      %cst_28 = arith.constant 2.000000e+00 : f32
      %33 = vector.broadcast %cst_28 : f32 to vector<8x1xf32>
      %34 = arith.mulf %33, %32 : vector<8x1xf32>
      %35 = arith.subf %31, %34 : vector<8x1xf32>
      %c0_29 = arith.constant 0 : index
      %c0_30 = arith.constant 0 : index
      %36 = vector.load %arg10[%c0_29, %c0_30] : memref<8x1xf32, #tpu.memory_space<vmem>>, vector<8x1xf32>
      %cst_31 = arith.constant 2.000000e+00 : f32
      %37 = vector.broadcast %cst_31 : f32 to vector<8x1xf32>
      %38 = arith.mulf %37, %36 : vector<8x1xf32>
      %39 = arith.subf %31, %38 : vector<8x1xf32>
      %cst_32 = arith.constant 9.99999997E-7 : f32
      %40 = vector.broadcast %cst_32 : f32 to vector<8x1xf32>
      %41 = arith.maximumf %35, %40 : vector<8x1xf32>
      %42 = math.sqrt %41 : vector<8x1xf32>
      %cst_33 = arith.constant 9.99999997E-7 : f32
      %43 = vector.broadcast %cst_33 : f32 to vector<8x1xf32>
      %44 = arith.maximumf %39, %43 : vector<8x1xf32>
      %45 = math.sqrt %44 : vector<8x1xf32>
      %46 = arith.subf %42, %45 : vector<8x1xf32>
      %cst_34 = arith.constant 3.000000e-01 : f32
      %47 = vector.broadcast %cst_34 : f32 to vector<8x1xf32>
      %48 = arith.addf %46, %47 : vector<8x1xf32>
      %cst_35 = arith.constant 0.000000e+00 : f32
      %49 = vector.broadcast %cst_35 : f32 to vector<8x1xf32>
      %50 = arith.maximumf %48, %49 : vector<8x1xf32>
      %c0_36 = arith.constant 0 : index
      %c0_37 = arith.constant 0 : index
      %51 = vector.load %arg8[%c0_36, %c0_37] : memref<8x1xf32, #tpu.memory_space<vmem>>, vector<8x1xf32>
      tpu.vector_store %arg8[%c0_36, %c0_37], %50 {strides = array<i32>} : memref<8x1xf32, #tpu.memory_space<vmem>>, vector<8x1xf32>,
    } else {
    }
    return
  }
  func.func @transform_0(%arg0: i32, %arg1: i32) -> (i32, i32) {
    %c0_i32 = arith.constant 0 : i32
    %c0_i32_0 = arith.constant 0 : i32
    return %arg0, %c0_i32 : i32, i32
  }
  func.func @transform_1(%arg0: i32, %arg1: i32) -> (i32, i32) {
    %c0_i32 = arith.constant 0 : i32
    %c0_i32_0 = arith.constant 0 : i32
    return %c0_i32, %arg1 : i32, i32
  }
  func.func @transform_2(%arg0: i32, %arg1: i32) -> (i32, i32) {
    %c0_i32 = arith.constant 0 : i32
    %c0_i32_0 = arith.constant 0 : i32
    return %arg0, %c0_i32 : i32, i32
  }
  func.func @transform_3(%arg0: i32, %arg1: i32) -> (i32, i32) {
    %c0_i32 = arith.constant 0 : i32
    %c0_i32_0 = arith.constant 0 : i32
    return %c0_i32, %arg1 : i32, i32
  }
  func.func @transform_4(%arg0: i32, %arg1: i32) -> (i32, i32) {
    %c0_i32 = arith.constant 0 : i32
    %c0_i32_0 = arith.constant 0 : i32
    return %arg0, %c0_i32 : i32, i32
  }
  func.func @transform_5(%arg0: i32, %arg1: i32) -> (i32, i32) {
    %c0_i32 = arith.constant 0 : i32
    %c0_i32_0 = arith.constant 0 : i32
    return %c0_i32, %arg1 : i32, i32
  }
  func.func @transform_6(%arg0: i32, %arg1: i32) -> (i32, i32) {
    %c0_i32 = arith.constant 0 : i32
    %c0_i32_0 = arith.constant 0 : i32
    return %arg0, %c0_i32 : i32, i32
  }
}

</mosaic_0001>

<llo_original>
// kernel: tpu_custom_call.1
$region0: #{tpu_custom_call.1}
  #allocation0 [shape = 'u32[]', space=smem, size = 0x4, offset = 0x4, fixed_abs, tag = 'smem constant byte address 0x4 - core index']
  #allocation1 [shape = 'u32[144,128]{1,0:T(1,128)}', space=vmem, size = 0x12000, scoped, tag = 'internal scratch']
  #allocation2 [shape = 'f32[8,1]{1,0:T(8,128)}', space=vmem, size = 0x1000, scoped, tag = 'scratch operand']
  #allocation3 [shape = 'f32[8,1]{1,0:T(8,128)}', space=vmem, size = 0x1000, scoped, tag = 'scratch operand']
  %s0 = inlined_call_operand.vmem [shape: f32[8,32], index: 0, kind: input, shape index: {}]
  %s1 = inlined_call_operand.hbm [shape: f32[32,128], index: 1, kind: input, shape index: {}]
  %s2 = inlined_call_operand.vmem [shape: f32[8,1], index: 2, kind: input, shape index: {}]
  %s3 = inlined_call_operand.vmem [shape: f32[1,128], index: 3, kind: input, shape index: {}]
  %s4 = inlined_call_operand.vmem [shape: s32[8,1], index: 4, kind: input, shape index: {}]
  %s5 = inlined_call_operand.vmem [shape: s32[1,128], index: 5, kind: input, shape index: {}]
  %s6 = inlined_call_operand.vmem [shape: f32[8,1], index: 6, kind: output, shape index: {}]
  %s7 = sld [smem:[#allocation0]]
  $region46: #{tpu_custom_call.1} parent=0
    _
  %s9 = ssub.s32 1, %s7
  %s10 = scalar_select 0, %s9, %s7
  $region1: #{tpu_custom_call.1} parent=0
    #allocation4 [shape = 'u8[16384]{0}', space=vmem, size = 0x4000, scoped, tag = 'input window, operand 1, single buffered']
    #allocation5 [shape = 's32[1]{0}', space=sflag, size = 0x4, scoped, tag = 'scoped memory for tpu_custom_call.1']
    %11 = vsyncpa [#allocation5], 0
    // Predicated region
    $region2: #{tpu_custom_call.1} parent=1 // pred_check
      _
    $region3: #{tpu_custom_call.1} parent=1 // pred_check_branch
      %13 = sbr.rel (0) target = $region5
    $region4: #{tpu_custom_call.1} parent=1 // pred_region
      _
    $region5: #{tpu_custom_call.1} parent=1 // pred_fallthru
      _
    // Predicated region
    $region6: #{tpu_custom_call.1} parent=1 // pred_check
      _
    $region7: #{tpu_custom_call.1} parent=1 // pred_check_branch
      %15 = sbr.rel (0) target = $region9
    $region8: #{tpu_custom_call.1} parent=1 // pred_region
      %s17 = ssub.s32 512, 512
      %18 = vsyncadd [#allocation5], %s17
      %s19 = sshll.u32 [#allocation4], 4
      %s20 = int_to_ptr.vmem [resolvable:$true] %s19
      %25 = dma.hbm_to_vmem [thread:$0]  %s1, 512, %s20, [#allocation5], 128, 128, 8
    $region9: #{tpu_custom_call.1} parent=1 // pred_fallthru
      _
    // Predicated region
    $region10: #{tpu_custom_call.1} parent=1 // pred_check
      _
    $region11: #{tpu_custom_call.1} parent=1 // pred_check_branch
      %27 = sbr.rel (0) target = $region13
    $region12: #{tpu_custom_call.1} parent=1 // pred_region
      _
    $region13: #{tpu_custom_call.1} parent=1 // pred_fallthru
      _
    // Predicated region
    $region14: #{tpu_custom_call.1} parent=1 // pred_check
      _
    $region15: #{tpu_custom_call.1} parent=1 // pred_check_branch
      %29 = sbr.rel (0) target = $region17
    $region16: #{tpu_custom_call.1} parent=1 // pred_region
      _
    $region17: #{tpu_custom_call.1} parent=1 // pred_fallthru
      _
    // Predicated region
    $region18: #{tpu_custom_call.1} parent=1 // pred_check
      _
    $region19: #{tpu_custom_call.1} parent=1 // pred_check_branch
      %31 = sbr.rel (0) target = $region21
    $region20: #{tpu_custom_call.1} parent=1 // pred_region
      _
    $region21: #{tpu_custom_call.1} parent=1 // pred_fallthru
      _
    // Predicated region
    $region22: #{tpu_custom_call.1} parent=1 // pred_check
      _
    $region23: #{tpu_custom_call.1} parent=1 // pred_check_branch
      %33 = sbr.rel (0) target = $region25
    $region24: #{tpu_custom_call.1} parent=1 // pred_region
      _
    $region25: #{tpu_custom_call.1} parent=1 // pred_fallthru
      _
    // Predicated region
    $region26: #{tpu_custom_call.1} parent=1 // pred_check
      _
    $region27: #{tpu_custom_call.1} parent=1 // pred_check_branch
      %35 = sbr.rel (0) target = $region29
    $region28: #{tpu_custom_call.1} parent=1 // pred_region
      %36 = dma.done [#allocation5], 512
    $region29: #{tpu_custom_call.1} parent=1 // pred_fallthru
      _
    %p37 = scmp.eq.s32.totalorder 0, 0
    // Predicated region
    $region30: #{tpu_custom_call.1} parent=1 // pred_check
      %p38 = pneg %p37
    $region31: #{tpu_custom_call.1} parent=1 // pred_check_branch
      %40 = sbr.rel (%p38) target = $region33
    $region32: #{tpu_custom_call.1} parent=1 // pred_region
      %vm41 = vcmask 7168
      %42 = vst.msk [vmem:[#allocation2] sm:$0xff] %vm41, inf
      %43 = vst.msk [vmem:[#allocation3] sm:$0xff] %vm41, -inf
    $region33: #{tpu_custom_call.1} parent=1 // pred_fallthru
      _
    %v44 = vld [vmem:[%s0] sm:$0xff]
    %v45 = vld [vmem:[#allocation4] sm:$0xff]
    %v46 = vld [vmem:[#allocation4 + $0x8] sm:$0xff]
    %v47 = vld [vmem:[#allocation4 + $0x10] sm:$0xff]
    %v48 = vld [vmem:[#allocation4 + $0x18] sm:$0xff]
    %vm49 = vcmask 261120
    %v51 = vsel %vm49, %v44, 0
    %53 = vmatprep.subr.mxu0 0.0
    %54 = vmatpush1.msra.mxu0 %v45
    %55 = vmatprep.subr.mxu0 0.0
    %56 = vmatpush1.msra.mxu0 %v46
    %57 = vmatprep.subr.mxu0 0.0
    %58 = vmatpush1.msra.mxu0 %v47
    %59 = vmatprep.subr.mxu0 0.0
    %60 = vmatpush1.msra.mxu0 %v48
    %61 = vmatprep.subr.mxu0 0.0
    %62 = vmatpush1.msra.mxu0 0.0
    %63 = vmatprep.subr.mxu0 0.0
    %64 = vmatpush1.msra.mxu0 0.0
    %65 = vmatprep.subr.mxu0 0.0
    %66 = vmatpush1.msra.mxu0 0.0
    %67 = vmatprep.subr.mxu0 0.0
    %68 = vmatpush1.msra.mxu0 0.0
    %69 = vmatprep.subr.mxu0 0.0
    %70 = vmatpush1.msra.mxu0 0.0
    %71 = vmatprep.subr.mxu0 0.0
    %72 = vmatpush1.msra.mxu0 0.0
    %73 = vmatprep.subr.mxu0 0.0
    %74 = vmatpush1.msra.mxu0 0.0
    %75 = vmatprep.subr.mxu0 0.0
    %76 = vmatpush1.msra.mxu0 0.0
    %77 = vmatprep.subr.mxu0 0.0
    %78 = vmatpush1.msra.mxu0 0.0
    %79 = vmatprep.subr.mxu0 0.0
    %80 = vmatpush1.msra.mxu0 0.0
    %81 = vmatprep.subr.mxu0 0.0
    %82 = vmatpush1.msra.mxu0 0.0
    %83 = vmatprep.subr.mxu0 0.0
    %84 = vmatpush1.msra.mxu0 0.0
    %85 = vmatprep.subr.mxu0 0.0
    %86 = vmatpush1.msra.mxu0 0.0
    %87 = vmatprep.subr.mxu0 0.0
    %88 = vmatpush1.msra.mxu0 0.0
    %89 = vmatprep.subr.mxu0 0.0
    %90 = vmatpush1.msra.mxu0 0.0
    %91 = vmatprep.subr.mxu0 0.0
    %92 = vmatpush1.msra.mxu0 0.0
    %93 = vmatprep.subr.mxu0 0.0
    %94 = vmatpush1.msra.mxu0 0.0
    %95 = vmatprep.subr.mxu0 0.0
    %96 = vmatpush1.msra.mxu0 0.0
    %97 = vmatprep.subr.mxu0 0.0
    %98 = vmatpush1.msra.mxu0 0.0
    %99 = vmatprep.subr.mxu0 0.0
    %100 = vmatpush1.msra.mxu0 0.0
    %101 = vmatprep.subr.mxu0 0.0
    %102 = vmatpush1.msra.mxu0 0.0
    %103 = vmatprep.subr.mxu0 0.0
    %104 = vmatpush1.msra.mxu0 0.0
    %105 = vmatprep.subr.mxu0 0.0
    %106 = vmatpush1.msra.mxu0 0.0
    %107 = vmatprep.subr.mxu0 0.0
    %108 = vmatpush1.msra.mxu0 0.0
    %109 = vmatprep.subr.mxu0 0.0
    %110 = vmatpush1.msra.mxu0 0.0
    %111 = vmatprep.subr.mxu0 0.0
    %112 = vmatpush1.msra.mxu0 0.0
    %113 = vmatprep.subr.mxu0 0.0
    %114 = vmatpush1.msra.mxu0 0.0
    %115 = vmatprep.subr.mxu0 0.0
    %116 = vmatpush1.msra.mxu0 0.0
    %117 = vmatprep.mubr.f32.mxu0 0.0
    %118 = vmatmul.mubr.f32.gmra.mrb[0].mxu0 %v51
    %v119 = vpop.f32.mrb[0].mxu0
    %v120 = vadd.f32 0.0, %v119
    %v121 = vpop.f32.mrb[0].mxu0
    %122 = vdwg.mxu0
    %v123 = vld [vmem:[%s3] sm:$0x1]
    %v125 = vlaneseq
    %v126 = vshrl.u32 %v125, 7
    %v127 = vsub.s32 0, %v126
    %v128 = vrot.slane %v123, %v127
    %v130 = vsub.f32 %v120, %v128
    %v131 = vld [vmem:[%s4] sm:$0xff]
    %v132 = vld [vmem:[%s5] sm:$0x1]
    %133 = vset.pattern.permute.xlu0 0
    %134 = vperm.xlu0 %133, %v131
    %v135 = vpop.permute.xlu0 %134
    %v136 = vlaneseq
    %v137 = vshrl.u32 %v136, 7
    %v138 = vsub.s32 0, %v137
    %v139 = vrot.slane %v132, %v138
    %vm140 = vcmp.eq.s32.totalorder %v135, %v139
    %v141 = vsel %vm140, %v130, inf
    %142 = vmin.xlane.f32.xlu0 %v141
    %v143 = vpop.xlane.xlu0 %142
    %v144 = vsel %vm140, -inf, %v130
    %145 = vmax.xlane.f32.xlu0 %v144
    %v146 = vpop.xlane.xlu0 %145
    %v147 = vld [vmem:[#allocation2] sm:$0xff]
    %v148 = vmin.f32 %v147, %v143
    %vm149 = vcmask 7168
    %150 = vst.msk [vmem:[#allocation2] sm:$0xff] %vm149, %v148
    %v151 = vld [vmem:[#allocation3] sm:$0xff]
    %v152 = vmax.f32 %v151, %v146
    %153 = vst.msk [vmem:[#allocation3] sm:$0xff] %vm149, %v152
    // Predicated region
    $region34: #{tpu_custom_call.1} parent=1 // pred_check
      %p154 = pneg %p37
    $region35: #{tpu_custom_call.1} parent=1 // pred_check_branch
      %156 = sbr.rel (%p154) target = $region37
    $region36: #{tpu_custom_call.1} parent=1 // pred_region
      %v157 = vld [vmem:[%s2] sm:$0xff]
      %v158 = vld [vmem:[#allocation2] sm:$0xff]
      %v159 = vmul.f32 %v158, 2.0
      %v160 = vsub.f32 %v157, %v159
      %v161 = vld [vmem:[#allocation3] sm:$0xff]
      %v162 = vmul.f32 %v161, 2.0
      %v163 = vsub.f32 %v157, %v162
      %v164 = vmax.f32 %v160, 1e-06
      %v165 = vrsqrt.pop %v164
      %v166 = vmul.f32 %v164, %v165
      %vm167 = vcmp.eq.f32.partialorder %v164, inf
      %v168 = vsel %vm167, %v164, %v166
      %vm169 = vcmp.eq.f32.partialorder %v164, 0.0
      %v170 = vand.u32 %v164, 2147483648
      %v171 = vsel %vm169, %v170, %v168
      %v172 = vmax.f32 %v163, 1e-06
      %v173 = vrsqrt.pop %v172
      %v174 = vmul.f32 %v172, %v173
      %vm175 = vcmp.eq.f32.partialorder %v172, inf
      %v176 = vsel %vm175, %v172, %v174
      %vm177 = vcmp.eq.f32.partialorder %v172, 0.0
      %v178 = vand.u32 %v172, 2147483648
      %v179 = vsel %vm177, %v178, %v176
      %v180 = vsub.f32 %v171, %v179
      %v181 = vadd.f32 %v180, 0.3
      %v182 = vmax.f32 %v181, 0.0
      %183 = vst.msk [vmem:[%s6] sm:$0xff] %vm149, %v182
    $region37: #{tpu_custom_call.1} parent=1 // pred_fallthru
      _
    // Predicated region
    $region38: #{tpu_custom_call.1} parent=1 // pred_check
      _
    $region39: #{tpu_custom_call.1} parent=1 // pred_check_branch
      %185 = sbr.rel (0) target = $region41
    $region40: #{tpu_custom_call.1} parent=1 // pred_region
      _
    $region41: #{tpu_custom_call.1} parent=1 // pred_fallthru
      _
    // Predicated region
    $region42: #{tpu_custom_call.1} parent=1 // pred_check
      _
    $region43: #{tpu_custom_call.1} parent=1 // pred_check_branch
      %187 = sbr.rel (0) target = $region45
    $region44: #{tpu_custom_call.1} parent=1 // pred_region
      _
    $region45: #{tpu_custom_call.1} parent=1 // pred_fallthru
      _
    %188 = vsyncpa [#allocation5], 1

</llo_original>
